<compile_context>
chip_gen: v7x
topology: tpu7x:2x2x1
jax: 0.10.0
libtpu: 0.0.40
codegen_flags: <defaults>
</compile_context>

<pallas_src>
import jax
import jax.numpy as jnp
from jax.experimental import pallas as pl
from jax.experimental.pallas import tpu as pltpu


def _round_up(a, b):
    return ((a + b - 1) // b) * b


def _vmem_capacity_bytes():
    """Physical VMEM of the current TPU; conservative 64 MiB (v7x per-TC) fallback."""
    try:
        cap = getattr(pltpu.get_tpu_info(), "vmem_capacity_bytes", None)
        if cap:
            return int(cap)
    except Exception:
        pass
    return 64 * 1024 * 1024


def _make_linear_kernel(compute_dtype):
    def kernel(x_ref, w_ref, b_ref, o_ref):
        # x_ref: (tm, D) native dtype, w_ref: (D, C) compute dtype,
        # b_ref: (1, C) f32, o_ref: (tm, C) out dtype
        xt = x_ref[...]
        if compute_dtype is not None and xt.dtype != compute_dtype:
            xt = xt.astype(compute_dtype)          # cast right before the MXU dot
        acc = jnp.dot(xt, w_ref[...], preferred_element_type=jnp.float32)
        o_ref[...] = (acc + b_ref[...]).astype(o_ref.dtype)   # f32 epilogue (v5e safe)
    return kernel


def _make_linear_kernel_ktiled(compute_dtype):
    def kernel(x_ref, w_ref, b_ref, o_ref, acc_ref):
        k = pl.program_id(1)

        @pl.when(k == 0)
        def _():
            acc_ref[...] = jnp.zeros_like(acc_ref)

        xt = x_ref[...]
        if compute_dtype is not None and xt.dtype != compute_dtype:
            xt = xt.astype(compute_dtype)
        acc_ref[...] += jnp.dot(xt, w_ref[...], preferred_element_type=jnp.float32)

        @pl.when(k == pl.num_programs(1) - 1)
        def _():
            o_ref[...] = (acc_ref[...] + b_ref[...]).astype(o_ref.dtype)
    return kernel


def decoder_linear_bev_forward(x, weight, bias, im_size=None, skip=None, *,
                               tm=None, compute_dtype=jnp.bfloat16, out_dtype=None):
    """Pallas implementation of DecoderLinear_bev.forward.

    x:      (B, N, d_encoder)           -- passed at native dtype (no wrapper cast/pad)
    weight: (n_cls, d_encoder)          -- PyTorch nn.Linear weight layout
    bias:   (n_cls,)
    compute_dtype: MXU operand dtype (None => keep native dtype, f32-exact path)
    out_dtype:     output dtype (None => x.dtype)
    returns (B, N, n_cls)
    """
    del im_size, skip  # forward only unpacks im_size; it does not use it

    B, N, D = x.shape
    n_cls = weight.shape[0]
    out_dtype = jnp.dtype(x.dtype) if out_dtype is None else jnp.dtype(out_dtype)

    x_bytes = jnp.dtype(x.dtype).itemsize
    out_bytes = out_dtype.itemsize

    # Tiny tensors only: pre-transpose + cast the weight once in the wrapper.
    w_dtype = jnp.dtype(compute_dtype) if compute_dtype is not None else jnp.dtype(weight.dtype)
    w_bytes = w_dtype.itemsize
    wt = weight.T.astype(w_dtype)                      # (D, n_cls)
    b2d = bias.astype(jnp.float32).reshape(1, n_cls)   # (1, n_cls)

    M = B * N
    x2d = x.reshape(M, D)                              # metadata-only reshape; no cast / pad

    cap = _vmem_capacity_bytes()
    budget = max(24 << 20, int(cap * 0.45))            # ~28 MiB on v7x, ~57 MiB on v5e/v6e
    vmem_limit = int(min(0.9 * cap, budget + (16 << 20)))

    sub_align = 16                                     # bf16-friendly sublane alignment (ok for f32)
    row_align = 256

    # Resident (single-buffered) weight footprint; decide whether K-tiling is needed.
    resident_w = n_cls * D * w_bytes
    use_ktile = resident_w > budget // 2
    tk = None
    if use_ktile:
        for cand in (2048, 1024, 512, 256):
            if D % cand == 0 and cand < D:
                tk = cand
                break
        if tk is None:
            use_ktile = False                          # D has no nice divisor; single-shot K

    if tm is None:
        if M <= row_align:
            tm = _round_up(max(M, sub_align), sub_align)
        else:
            # Cap so the grid has >= 2 row tiles ("parallel" can use both v7x TensorCores).
            tm_cap = max(row_align, min(2048, _round_up(pl.cdiv(M, 2), row_align)))
            tm = tm_cap
            if use_ktile:
                per_row = 2 * (tk * x_bytes + n_cls * out_bytes) + n_cls * 4   # x/out dbl-buf + f32 acc
                fixed = 2 * tk * n_cls * w_bytes + n_cls * 4                   # dbl-buf w tile + bias
            else:
                per_row = 2 * (D * x_bytes + n_cls * out_bytes)                # x/out dbl-buf
                fixed = resident_w + n_cls * 4                                 # Buffered(1) w + bias
            while tm > row_align and tm * per_row + fixed > budget:
                tm -= row_align
            tm = max(tm, row_align)
    tm = max(sub_align, _round_up(tm, sub_align))

    n_row = pl.cdiv(M, tm)

    if not use_ktile:
        out2d = pl.pallas_call(
            _make_linear_kernel(compute_dtype),
            out_shape=jax.ShapeDtypeStruct((M, n_cls), out_dtype),
            grid_spec=pltpu.PrefetchScalarGridSpec(
                num_scalar_prefetch=0,
                grid=(n_row,),
                in_specs=[
                    pl.BlockSpec((tm, D), lambda i: (i, 0)),                 # streamed token rows
                    pl.BlockSpec((D, n_cls), lambda i: (0, 0),
                                 pipeline_mode=pl.Buffered(1)),              # resident weight
                    pl.BlockSpec((1, n_cls), lambda i: (0, 0),
                                 pipeline_mode=pl.Buffered(1)),              # resident bias
                ],
                out_specs=pl.BlockSpec((tm, n_cls), lambda i: (i, 0)),
            ),
            compiler_params=pltpu.CompilerParams(
                dimension_semantics=("parallel",),
                vmem_limit_bytes=vmem_limit,
            ),
        )(x2d, wt, b2d)
    else:
        n_k = D // tk
        out2d = pl.pallas_call(
            _make_linear_kernel_ktiled(compute_dtype),
            out_shape=jax.ShapeDtypeStruct((M, n_cls), out_dtype),
            grid_spec=pltpu.PrefetchScalarGridSpec(
                num_scalar_prefetch=0,
                grid=(n_row, n_k),
                in_specs=[
                    pl.BlockSpec((tm, tk), lambda i, k: (i, k)),
                    pl.BlockSpec((tk, n_cls), lambda i, k: (k, 0)),
                    pl.BlockSpec((1, n_cls), lambda i, k: (0, 0),
                                 pipeline_mode=pl.Buffered(1)),
                ],
                out_specs=pl.BlockSpec((tm, n_cls), lambda i, k: (i, 0)),
                scratch_shapes=[pltpu.VMEM((tm, n_cls), jnp.float32)],
            ),
            compiler_params=pltpu.CompilerParams(
                dimension_semantics=("parallel", "arbitrary"),
                vmem_limit_bytes=vmem_limit,
            ),
        )(x2d, wt, b2d)

    return out2d.reshape(B, N, n_cls)


def init_decoder_linear_bev_params(key, n_cls, d_encoder):
    """Deterministic synthetic init mirroring init_weights (trunc_normal std=0.02, zero bias)."""
    wkey, _ = jax.random.split(key)
    weight = 0.02 * jax.random.truncated_normal(
        wkey, -2.0, 2.0, (n_cls, d_encoder), dtype=jnp.float32)
    bias = jnp.zeros((n_cls,), dtype=jnp.float32)
    return weight, bias


if __name__ == "__main__":
    key = jax.random.PRNGKey(0)
    k_x, k_p = jax.random.split(key)

    # Small shapes consistent with the module:
    #   batch=2, seq (num patches) = 16, d_encoder=32, n_cls=8
    B, Npatch, d_encoder, n_cls = 2, 16, 32, 8
    patch_size = 4
    im_size = (patch_size * 4, patch_size * 4)   # unused by forward (only unpacked)

    x = jax.random.normal(k_x, (B, Npatch, d_encoder), dtype=jnp.float32)
    weight, bias = init_decoder_linear_bev_params(k_p, n_cls, d_encoder)

    # Default path: bf16 MXU operands, f32 accumulation, f32 output.
    out = decoder_linear_bev_forward(x, weight, bias, im_size)
    out = jax.block_until_ready(out)
    assert out.shape == (B, Npatch, n_cls)

    # Reference 1: same math at the kernel's compute precision (bf16 operands, f32 acc).
    x_bf = x.astype(jnp.bfloat16).astype(jnp.float32)
    w_bf = weight.astype(jnp.bfloat16).astype(jnp.float32)
    ref_bf16 = x_bf @ w_bf.T + bias
    assert jnp.allclose(out, ref_bf16, atol=1e-4, rtol=1e-4)

    # Reference 2: sanity against the full-f32 nn.Linear (loose tolerance for bf16 operands).
    ref_f32 = x @ weight.T + bias
    assert jnp.allclose(out, ref_f32, atol=5e-2, rtol=5e-2)

    # f32-exact opt-out path (compute_dtype=None): tight tolerance vs the f32 reference.
    out_f32 = decoder_linear_bev_forward(x, weight, bias, im_size, compute_dtype=None)
    out_f32 = jax.block_until_ready(out_f32)
    assert jnp.allclose(out_f32, ref_f32, atol=1e-4, rtol=1e-4)

    print("KERNEL_OK")
</pallas_src>

<mosaic_0001>
module attributes {stable_mosaic.version = 11 : i64} {
  func.func @kernel(%arg0: i32, %arg1: memref<32x32xf32, #tpu.memory_space<vmem>>, %arg2: memref<32x8xbf16, #tpu.memory_space<vmem>>, %arg3: memref<1x8xf32, #tpu.memory_space<vmem>>, %arg4: memref<32x8xf32, #tpu.memory_space<vmem>>) attributes {dimension_semantics = [#tpu.dimension_semantics<parallel>], iteration_bounds = array<i64: 1>, scalar_prefetch = 0 : i64, scratch_operands = 0 : i64, tpu.core_type = #tpu.core_type<tc>, window_params = [{transform_indices = @transform_0, window_bounds = array<i64: 32, 32>}, {pipeline_mode = #tpu.pipeline_mode<synchronous>, transform_indices = @transform_1, window_bounds = array<i64: 32, 8>}, {pipeline_mode = #tpu.pipeline_mode<synchronous>, transform_indices = @transform_2, window_bounds = array<i64: 1, 8>}, {transform_indices = @transform_3, window_bounds = array<i64: 32, 8>}]} {
    %c0 = arith.constant 0 : index
    %c0_0 = arith.constant 0 : index
    %0 = vector.load %arg1[%c0, %c0_0] : memref<32x32xf32, #tpu.memory_space<vmem>>, vector<32x32xf32>
    %1 = arith.truncf %0 : vector<32x32xf32> to vector<32x32xbf16>
    %c0_1 = arith.constant 0 : index
    %c0_2 = arith.constant 0 : index
    %2 = vector.load %arg2[%c0_1, %c0_2] : memref<32x8xbf16, #tpu.memory_space<vmem>>, vector<32x8xbf16>
    %cst = arith.constant dense<0.000000e+00> : vector<32x8xf32>
    %3 = tpu.matmul %1, %2, %cst {dimension_numbers = #tpu.dot_dimension_numbers<[1], [0], [0], [1], [0, 0, 1, 1], [], []>} : vector<32x32xbf16>, vector<32x8xbf16>, vector<32x8xf32> -> vector<32x8xf32>
    %c0_3 = arith.constant 0 : index
    %c0_4 = arith.constant 0 : index
    %4 = vector.load %arg3[%c0_3, %c0_4] : memref<1x8xf32, #tpu.memory_space<vmem>>, vector<1x8xf32>
    %5 = vector.broadcast %4 : vector<1x8xf32> to vector<32x8xf32>
    %6 = arith.addf %3, %5 : vector<32x8xf32>
    %c0_5 = arith.constant 0 : index
    %c0_6 = arith.constant 0 : index
    %7 = vector.load %arg4[%c0_5, %c0_6] : memref<32x8xf32, #tpu.memory_space<vmem>>, vector<32x8xf32>
    tpu.vector_store %arg4[%c0_5, %c0_6], %6 {strides = array<i32>} : memref<32x8xf32, #tpu.memory_space<vmem>>, vector<32x8xf32>,
    return
  }
  func.func @transform_0(%arg0: i32) -> (i32, i32) {
    %c0_i32 = arith.constant 0 : i32
    %c0_i32_0 = arith.constant 0 : i32
    return %arg0, %c0_i32 : i32, i32
  }
  func.func @transform_1(%arg0: i32) -> (i32, i32) {
    %c0_i32 = arith.constant 0 : i32
    %c0_i32_0 = arith.constant 0 : i32
    %c0_i32_1 = arith.constant 0 : i32
    return %c0_i32, %c0_i32_0 : i32, i32
  }
  func.func @transform_2(%arg0: i32) -> (i32, i32) {
    %c0_i32 = arith.constant 0 : i32
    %c0_i32_0 = arith.constant 0 : i32
    %c0_i32_1 = arith.constant 0 : i32
    return %c0_i32, %c0_i32_0 : i32, i32
  }
  func.func @transform_3(%arg0: i32) -> (i32, i32) {
    %c0_i32 = arith.constant 0 : i32
    %c0_i32_0 = arith.constant 0 : i32
    return %arg0, %c0_i32 : i32, i32
  }
}

</mosaic_0001>

<llo_original>
// kernel: tpu_custom_call.1
$region0: #{tpu_custom_call.1}
  #allocation0 [shape = 'u32[]', space=smem, size = 0x4, offset = 0x4, fixed_abs, tag = 'smem constant byte address 0x4 - core index']
  #allocation1 [shape = 'u32[144,128]{1,0:T(1,128)}', space=vmem, size = 0x12000, scoped, tag = 'internal scratch']
  %s0 = inlined_call_operand.hbm [shape: f32[32,32], index: 0, kind: input, shape index: {}]
  %s1 = inlined_call_operand.vmem [shape: bf16[32,8], index: 1, kind: input, shape index: {}]
  %s2 = inlined_call_operand.vmem [shape: f32[1,8], index: 2, kind: input, shape index: {}]
  %s3 = inlined_call_operand.vmem [shape: f32[32,8], index: 3, kind: output, shape index: {}]
  %s4 = sld [smem:[#allocation0]]
  $region26: #{tpu_custom_call.1} parent=0
    _
  %s6 = ssub.s32 1, %s4
  %s7 = scalar_select 0, %s6, %s4
  $region1: #{tpu_custom_call.1} parent=0
    #allocation2 [shape = 'u8[16384]{0}', space=vmem, size = 0x4000, scoped, tag = 'input window, operand 0, single buffered']
    #allocation3 [shape = 's32[1]{0}', space=sflag, size = 0x4, scoped, tag = 'scoped memory for tpu_custom_call.1']
    %8 = vsyncpa [#allocation3], 0
    // Predicated region
    $region2: #{tpu_custom_call.1} parent=1 // pred_check
      _
    $region3: #{tpu_custom_call.1} parent=1 // pred_check_branch
      %10 = sbr.rel (0) target = $region5
    $region4: #{tpu_custom_call.1} parent=1 // pred_region
      %s12 = ssub.s32 512, 512
      %13 = vsyncadd [#allocation3], %s12
      %s14 = sshll.u32 [#allocation2], 4
      %s15 = int_to_ptr.vmem [resolvable:$true] %s14
      %20 = dma.hbm_to_vmem [thread:$0]  %s0, 512, %s15, [#allocation3], 128, 128, 8
    $region5: #{tpu_custom_call.1} parent=1 // pred_fallthru
      _
    // Predicated region
    $region6: #{tpu_custom_call.1} parent=1 // pred_check
      _
    $region7: #{tpu_custom_call.1} parent=1 // pred_check_branch
      %22 = sbr.rel (0) target = $region9
    $region8: #{tpu_custom_call.1} parent=1 // pred_region
      _
    $region9: #{tpu_custom_call.1} parent=1 // pred_fallthru
      _
    // Predicated region
    $region10: #{tpu_custom_call.1} parent=1 // pred_check
      _
    $region11: #{tpu_custom_call.1} parent=1 // pred_check_branch
      %24 = sbr.rel (0) target = $region13
    $region12: #{tpu_custom_call.1} parent=1 // pred_region
      _
    $region13: #{tpu_custom_call.1} parent=1 // pred_fallthru
      _
    // Predicated region
    $region14: #{tpu_custom_call.1} parent=1 // pred_check
      _
    $region15: #{tpu_custom_call.1} parent=1 // pred_check_branch
      %26 = sbr.rel (0) target = $region17
    $region16: #{tpu_custom_call.1} parent=1 // pred_region
      %27 = dma.done [#allocation3], 512
    $region17: #{tpu_custom_call.1} parent=1 // pred_fallthru
      _
    %v29 = vld [vmem:[#allocation2] sm:$0xff]
    %v30 = vld [vmem:[#allocation2 + $0x8] sm:$0xff]
    %v31 = vld [vmem:[#allocation2 + $0x10] sm:$0xff]
    %v32 = vld [vmem:[#allocation2 + $0x18] sm:$0xff]
    %v33 = vpack.c.bf16 %v30, %v29
    %v34 = vpack.c.bf16 %v32, %v31
    %v35 = vld [vmem:[%s1] sm:$0xf]
    %v36 = vld [vmem:[%s1 + $0x4] sm:$0xf]
    %v37 = vld [vmem:[%s1 + $0x8] sm:$0xf]
    %v38 = vld [vmem:[%s1 + $0xc] sm:$0xf]
    %v39 = vld [vmem:[%s2] sm:$0x1]
    %v41 = vlaneseq
    %v42 = vshrl.u32 %v41, 7
    %v43 = vsub.s32 0, %v42
    %v44 = vrot.slane %v39, %v43
    %v50 = vunpack.c.l.b16 %v35
    %v51 = vunpack.c.l.b16 %v36
    %v52 = vunpack.c.l.b16 %v37
    %v53 = vunpack.c.l.b16 %v38
    %v54 = vpack.c.b16 %v51, %v50
    %v55 = vpack.c.b16 %v53, %v52
    %vm58 = vcmask 261120
    %v60 = vsel %vm58, %v33, 0
    %v63 = vsel %vm58, %v34, 0
    %65 = vmatprep.subr.bf16.mxu0 0
    %66 = vmatpush1.bf16.msra.mxu0 %v54
    %67 = vmatprep.subr.bf16.mxu0 0
    %68 = vmatpush1.bf16.msra.mxu0 %v55
    %69 = vmatprep.subr.bf16.mxu0 0
    %70 = vmatpush1.bf16.msra.mxu0 0
    %71 = vmatprep.subr.bf16.mxu0 0
    %72 = vmatpush1.bf16.msra.mxu0 0
    %73 = vmatprep.subr.bf16.mxu0 0
    %74 = vmatpush1.bf16.msra.mxu0 0
    %75 = vmatprep.subr.bf16.mxu0 0
    %76 = vmatpush1.bf16.msra.mxu0 0
    %77 = vmatprep.subr.bf16.mxu0 0
    %78 = vmatpush1.bf16.msra.mxu0 0
    %79 = vmatprep.subr.bf16.mxu0 0
    %80 = vmatpush1.bf16.msra.mxu0 0
    %81 = vmatprep.subr.bf16.mxu0 0
    %82 = vmatpush1.bf16.msra.mxu0 0
    %83 = vmatprep.subr.bf16.mxu0 0
    %84 = vmatpush1.bf16.msra.mxu0 0
    %85 = vmatprep.subr.bf16.mxu0 0
    %86 = vmatpush1.bf16.msra.mxu0 0
    %87 = vmatprep.subr.bf16.mxu0 0
    %88 = vmatpush1.bf16.msra.mxu0 0
    %89 = vmatprep.subr.bf16.mxu0 0
    %90 = vmatpush1.bf16.msra.mxu0 0
    %91 = vmatprep.subr.bf16.mxu0 0
    %92 = vmatpush1.bf16.msra.mxu0 0
    %93 = vmatprep.subr.bf16.mxu0 0
    %94 = vmatpush1.bf16.msra.mxu0 0
    %95 = vmatprep.subr.bf16.mxu0 0
    %96 = vmatpush1.bf16.msra.mxu0 0
    %97 = vmatprep.mubr.bf16.mxu0 0
    %98 = vmatmul.mubr.bf16.gmra.mrb[0].mxu0 %v60
    %v99 = vpop.f32.mrb[0].mxu0
    %v100 = vadd.f32 %v44, %v99
    %v101 = vpop.f32.mrb[0].mxu0
    %v102 = vpop.f32.mrb[0].mxu0
    %v103 = vadd.f32 %v44, %v102
    %v104 = vpop.f32.mrb[0].mxu0
    %105 = vmatprep.mubr.bf16.mxu0 0
    %106 = vmatmul.mubr.bf16.gmra.mrb[0].mxu0 %v63
    %v107 = vpop.f32.mrb[0].mxu0
    %v108 = vadd.f32 %v44, %v107
    %v109 = vpop.f32.mrb[0].mxu0
    %v110 = vpop.f32.mrb[0].mxu0
    %v111 = vadd.f32 %v44, %v110
    %v112 = vpop.f32.mrb[0].mxu0
    %113 = vdwg.mxu0
    %vm114 = vcmask 64512
    %115 = vst.msk [vmem:[%s3] sm:$0xff] %vm114, %v100
    %116 = vst.msk [vmem:[%s3 + $0x8] sm:$0xff] %vm114, %v103
    %117 = vst.msk [vmem:[%s3 + $0x10] sm:$0xff] %vm114, %v108
    %118 = vst.msk [vmem:[%s3 + $0x18] sm:$0xff] %vm114, %v111
    // Predicated region
    $region18: #{tpu_custom_call.1} parent=1 // pred_check
      _
    $region19: #{tpu_custom_call.1} parent=1 // pred_check_branch
      %120 = sbr.rel (0) target = $region21
    $region20: #{tpu_custom_call.1} parent=1 // pred_region
      _
    $region21: #{tpu_custom_call.1} parent=1 // pred_fallthru
      _
    // Predicated region
    $region22: #{tpu_custom_call.1} parent=1 // pred_check
      _
    $region23: #{tpu_custom_call.1} parent=1 // pred_check_branch
      %122 = sbr.rel (0) target = $region25
    $region24: #{tpu_custom_call.1} parent=1 // pred_region
      _
    $region25: #{tpu_custom_call.1} parent=1 // pred_fallthru
      _
    %123 = vsyncpa [#allocation3], 1

</llo_original>
